<compile_context>
chip_gen: v5e
topology: v5e:2x2
jax: 0.10.0
libtpu: 0.0.40
codegen_flags: <defaults>
</compile_context>

<pallas_src>
import functools

import jax
import jax.numpy as jnp
from jax import lax
from jax.experimental import pallas as pl
from jax.experimental.pallas import tpu as pltpu


# Default rows-of-M per tile. Small here so the toy test actually exercises multi-step
# grids; for production shapes raise to ~512 (v5e, 16 MiB scoped VMEM) or 512-1024
# (v6e/v7x) so the double-buffered working set stays under the scoped VMEM limit.
_DEFAULT_M_TILE = 256


# ---------------------------------------------------------------------------
# tile-size helpers
# ---------------------------------------------------------------------------
def _pick_m_tile(m, target):
    """Largest M-tile <= target that is a multiple of 8 (or the full extent)."""
    if m <= target:
        return m
    t = min(target, m)
    t -= t % 8
    return max(t, 8)


def _pick_row_tile(nrows, width, m_target):
    """Largest divisor tr of nrows with tr*width <= m_target and tr*width % 8 == 0."""
    for tr in range(nrows, 0, -1):
        if nrows % tr == 0 and tr * width <= m_target and (tr * width) % 8 == 0:
            return tr
    return nrows


# ---------------------------------------------------------------------------
# Pallas kernels
# ---------------------------------------------------------------------------
def _conv1x1_bn_kernel(*refs, relu, has_residual):
    """out_tile = act( x_tile @ w * bn_scale + bn_shift [+ residual_tile] )."""
    if has_residual:
        x_ref, w_ref, scale_ref, shift_ref, res_ref, o_ref = refs
    else:
        x_ref, w_ref, scale_ref, shift_ref, o_ref = refs
    acc = jnp.dot(x_ref[...], w_ref[...], preferred_element_type=jnp.float32)
    out = acc * scale_ref[...] + shift_ref[...]
    if has_residual:
        out = out + res_ref[...]
    if relu:
        out = jnp.maximum(out, 0.0)
    o_ref[...] = out.astype(o_ref.dtype)


def _conv3x3_bn_relu_kernel(xt_ref, xm_ref, xb_ref, w_ref, scale_ref, shift_ref,
                            o_ref, *, width):
    """3x3 conv (pad=1) on a tile of rows.

    xt/xm/xb: (TR, W+2, Cin) bf16 row-shifted (halo'd) input tiles.
    w: (9, Cin, Cout) bf16 taps. out: (TR*W, Cout) f32, BN + ReLU fused.
    The 3 column shifts are static slices of the VMEM tile (no im2col in HBM).
    """
    tr = xt_ref.shape[0]
    cin = xt_ref.shape[-1]
    row_refs = (xt_ref, xm_ref, xb_ref)
    acc = jnp.zeros(o_ref.shape, jnp.float32)
    for ky in range(3):
        for kx in range(3):
            tap = row_refs[ky][:, kx:kx + width, :]          # (TR, W, Cin) bf16 load
            acc = acc + jnp.dot(tap.reshape(tr * width, cin), w_ref[ky * 3 + kx],
                                preferred_element_type=jnp.float32)
    out = acc * scale_ref[...] + shift_ref[...]
    o_ref[...] = jnp.maximum(out, 0.0).astype(o_ref.dtype)


def _avgpool_kernel(x_ref, o_ref, *, taps):
    """x: (taps, TM, C) window-major tile; out: (TM, C) mean over the window axis."""
    acc = x_ref[0]
    for t in range(1, taps):
        acc = acc + x_ref[t]
    o_ref[...] = (acc * (1.0 / taps)).astype(o_ref.dtype)


# ---------------------------------------------------------------------------
# pallas_call wrappers
# ---------------------------------------------------------------------------
def _conv1x1_call(x2d, w, scale, shift, residual=None, *, relu, tm=_DEFAULT_M_TILE):
    """Fused 1x1 conv + BN (+residual) (+ReLU), tiled over M = N*H*W."""
    M, Cin = x2d.shape
    Cout = w.shape[-1]
    tm_eff = _pick_m_tile(M, tm)
    grid = (pl.cdiv(M, tm_eff),)

    in_specs = [
        pl.BlockSpec((tm_eff, Cin), lambda i: (i, 0)),       # activation tile (pipelined)
        pl.BlockSpec((Cin, Cout), lambda i: (0, 0)),         # weights: VMEM-resident
        pl.BlockSpec((1, Cout), lambda i: (0, 0)),
        pl.BlockSpec((1, Cout), lambda i: (0, 0)),
    ]
    args = [x2d.astype(jnp.bfloat16), w.astype(jnp.bfloat16), scale, shift]
    if residual is not None:
        in_specs.append(pl.BlockSpec((tm_eff, Cout), lambda i: (i, 0)))
        args.append(residual)

    kernel = functools.partial(_conv1x1_bn_kernel, relu=relu,
                               has_residual=residual is not None)
    return pl.pallas_call(
        kernel,
        out_shape=jax.ShapeDtypeStruct((M, Cout), jnp.float32),
        grid=grid,
        in_specs=in_specs,
        out_specs=pl.BlockSpec((tm_eff, Cout), lambda i: (i, 0)),
        compiler_params=pltpu.CompilerParams(dimension_semantics=("parallel",)),
    )(*args)


def _conv3x3_bn_relu_call(x_nhwc, w_oihw, scale, shift, *, tm=_DEFAULT_M_TILE):
    """Fused 3x3 conv (pad=1) + BN + ReLU, tiled over rows of N*H."""
    N, H, W, C = x_nhwc.shape
    Cout = w_oihw.shape[0]

    xp = jnp.pad(x_nhwc, ((0, 0), (1, 1), (1, 1), (0, 0))).astype(jnp.bfloat16)
    # Three row-shifted views of the padded activation (flattened over N*H rows);
    # the kx shifts are taken inside the kernel from the VMEM tile.
    x_rows = [xp[:, ky:ky + H, :, :].reshape(N * H, W + 2, C) for ky in range(3)]
    w_taps = jnp.stack([w_oihw[:, :, ky, kx].T
                        for ky in range(3) for kx in range(3)],
                       axis=0).astype(jnp.bfloat16)           # (9, Cin, Cout)

    NH = N * H
    tr = _pick_row_tile(NH, W, tm)
    grid = (NH // tr,)

    in_specs = (
        [pl.BlockSpec((tr, W + 2, C), lambda i: (i, 0, 0))] * 3
        + [pl.BlockSpec((9, C, Cout), lambda i: (0, 0, 0)),   # taps VMEM-resident
           pl.BlockSpec((1, Cout), lambda i: (0, 0)),
           pl.BlockSpec((1, Cout), lambda i: (0, 0))]
    )
    out = pl.pallas_call(
        functools.partial(_conv3x3_bn_relu_kernel, width=W),
        out_shape=jax.ShapeDtypeStruct((NH * W, Cout), jnp.float32),
        grid=grid,
        in_specs=in_specs,
        out_specs=pl.BlockSpec((tr * W, Cout), lambda i: (i, 0)),
        compiler_params=pltpu.CompilerParams(dimension_semantics=("parallel",)),
    )(*x_rows, w_taps, scale, shift)
    return out.reshape(N, H, W, Cout)


def _avgpool_call(x_windows, *, tm=_DEFAULT_M_TILE):
    T, M, C = x_windows.shape
    tm_eff = _pick_m_tile(M, tm)
    grid = (pl.cdiv(M, tm_eff),)
    return pl.pallas_call(
        functools.partial(_avgpool_kernel, taps=T),
        out_shape=jax.ShapeDtypeStruct((M, C), jnp.float32),
        grid=grid,
        in_specs=[pl.BlockSpec((T, tm_eff, C), lambda i: (0, i, 0))],
        out_specs=pl.BlockSpec((tm_eff, C), lambda i: (i, 0)),
        compiler_params=pltpu.CompilerParams(dimension_semantics=("parallel",)),
    )(x_windows)


def _avgpool2d(x_nhwc, s, *, tm=_DEFAULT_M_TILE):
    """nn.AvgPool2d(s): kernel=s, stride=s (spatial dims assumed divisible by s)."""
    N, H, W, C = x_nhwc.shape
    Ho, Wo = H // s, W // s
    xw = (x_nhwc.reshape(N, Ho, s, Wo, s, C)
          .transpose(2, 4, 0, 1, 3, 5)
          .reshape(s * s, N * Ho * Wo, C))
    return _avgpool_call(xw, tm=tm).reshape(N, Ho, Wo, C)


# ---------------------------------------------------------------------------
# parameter setup (glue, plain JAX)
# ---------------------------------------------------------------------------
def masked_weight(w, mask_real, threshold):
    # ElementWiseConv2d with threshold_fn='binarizer': hard-threshold the real-valued
    # mask and multiply element-wise into the conv weight.
    return w * (mask_real > threshold).astype(w.dtype)


def _bn_fold(bn, eps=1e-5):
    scale = bn["gamma"] / jnp.sqrt(bn["var"] + eps)
    shift = bn["beta"] - bn["mean"] * scale
    return scale.reshape(1, -1), shift.reshape(1, -1)


def init_params(key, inplanes, planes, stride, mask_scale):
    exp = 4
    keys = jax.random.split(key, 12)

    def conv_w(k, cout, cin, ksz):
        fan_in = cin * ksz * ksz
        return jax.random.normal(k, (cout, cin, ksz, ksz), jnp.float32) / jnp.sqrt(fan_in)

    def mask(k, cout, cin, ksz):
        # mask_init='uniform': U(-1, 1) * mask_scale
        return jax.random.uniform(k, (cout, cin, ksz, ksz), jnp.float32, -1.0, 1.0) * mask_scale

    def bn(k, c):
        kg, kb, km, kv = jax.random.split(k, 4)
        return dict(
            gamma=jax.random.uniform(kg, (c,), jnp.float32, 0.5, 1.5),
            beta=jax.random.normal(kb, (c,), jnp.float32) * 0.1,
            mean=jax.random.normal(km, (c,), jnp.float32) * 0.1,
            var=jax.random.uniform(kv, (c,), jnp.float32, 0.5, 1.5),
        )

    p = {
        "conv1_w": conv_w(keys[0], planes, inplanes, 1),
        "conv1_m": mask(keys[1], planes, inplanes, 1),
        "bn1": bn(keys[2], planes),
        "conv2_w": conv_w(keys[3], planes, planes, 3),
        "conv2_m": mask(keys[4], planes, planes, 3),
        "bn2": bn(keys[5], planes),
        "conv3_w": conv_w(keys[6], planes * exp, planes, 1),
        "conv3_m": mask(keys[7], planes * exp, planes, 1),
        "bn3": bn(keys[8], planes * exp),
    }
    if stride > 1 or inplanes != planes * exp:
        p["ds_w"] = conv_w(keys[9], planes * exp, inplanes, 1)
        p["ds_m"] = mask(keys[10], planes * exp, inplanes, 1)
        p["bn_ds"] = bn(keys[11], planes * exp)
    return p


# ---------------------------------------------------------------------------
# MaskBottleneck forward (Pallas)
# ---------------------------------------------------------------------------
def mask_bottleneck_forward(x_nchw, p, *, stride, threshold, tm=_DEFAULT_M_TILE):
    N, Cin, H, W = x_nchw.shape
    x = jnp.transpose(x_nchw, (0, 2, 3, 1)).astype(jnp.float32)   # NCHW -> NHWC
    planes = p["conv1_w"].shape[0]
    Cout = planes * 4

    # conv1 (1x1, masked) + bn1 + relu
    w1 = masked_weight(p["conv1_w"], p["conv1_m"], threshold).reshape(planes, Cin).T
    s1, b1 = _bn_fold(p["bn1"])
    out = _conv1x1_call(x.reshape(N * H * W, Cin), w1, s1, b1, relu=True, tm=tm)
    out = out.reshape(N, H, W, planes)

    # conv2 (3x3, pad=1, masked) + bn2 + relu -- halo'd row tiles, 9 in-kernel taps
    w2 = masked_weight(p["conv2_w"], p["conv2_m"], threshold)     # (planes, planes, 3, 3)
    s2, b2 = _bn_fold(p["bn2"])
    out = _conv3x3_bn_relu_call(out, w2, s2, b2, tm=tm)

    # avgpool(stride) on the main path
    if stride > 1:
        out = _avgpool2d(out, stride, tm=tm)
    Ho, Wo = out.shape[1], out.shape[2]

    # identity / downsample branch: AvgPool2d(stride) -> 1x1 masked conv -> bn
    if "ds_w" in p:
        idn = _avgpool2d(x, stride, tm=tm) if stride > 1 else x
        wds = masked_weight(p["ds_w"], p["ds_m"], threshold).reshape(Cout, Cin).T
        sds, bds = _bn_fold(p["bn_ds"])
        identity = _conv1x1_call(idn.reshape(N * Ho * Wo, Cin), wds, sds, bds,
                                 relu=False, tm=tm)
    else:
        identity = x.reshape(N * Ho * Wo, Cout)

    # conv3 (1x1, masked) + bn3 + residual add + relu, fused in one kernel
    w3 = masked_weight(p["conv3_w"], p["conv3_m"], threshold).reshape(Cout, planes).T
    s3, b3 = _bn_fold(p["bn3"])
    out = _conv1x1_call(out.reshape(N * Ho * Wo, planes), w3, s3, b3,
                        residual=identity, relu=True, tm=tm)
    out = out.reshape(N, Ho, Wo, Cout)
    return jnp.transpose(out, (0, 3, 1, 2))                       # back to NCHW


# ---------------------------------------------------------------------------
# pure-JAX reference (for correctness check only; same bf16-operand / f32-accum
# precision contract as the kernels)
# ---------------------------------------------------------------------------
def reference_forward(x, p, *, stride, threshold, eps=1e-5):
    def conv(x, w, pad):
        return lax.conv_general_dilated(
            x.astype(jnp.bfloat16), w.astype(jnp.bfloat16),
            window_strides=(1, 1), padding=((pad, pad), (pad, pad)),
            dimension_numbers=("NCHW", "OIHW", "NCHW"),
            preferred_element_type=jnp.float32,
        )

    def bn(x, b):
        g = b["gamma"].reshape(1, -1, 1, 1)
        bt = b["beta"].reshape(1, -1, 1, 1)
        m = b["mean"].reshape(1, -1, 1, 1)
        v = b["var"].reshape(1, -1, 1, 1)
        return (x - m) / jnp.sqrt(v + eps) * g + bt

    def pool(x, s):
        if s <= 1:
            return x
        N, C, H, W = x.shape
        return x.reshape(N, C, H // s, s, W // s, s).mean(axis=(3, 5))

    relu = lambda t: jnp.maximum(t, 0.0)
    out = relu(bn(conv(x, masked_weight(p["conv1_w"], p["conv1_m"], threshold), 0), p["bn1"]))
    out = relu(bn(conv(out, masked_weight(p["conv2_w"], p["conv2_m"], threshold), 1), p["bn2"]))
    out = pool(out, stride)
    out = bn(conv(out, masked_weight(p["conv3_w"], p["conv3_m"], threshold), 0), p["bn3"])
    if "ds_w" in p:
        idn = pool(x, stride)
        idn = bn(conv(idn, masked_weight(p["ds_w"], p["ds_m"], threshold), 0), p["bn_ds"])
    else:
        idn = x
    return relu(out + idn)


if __name__ == "__main__":
    key = jax.random.PRNGKey(0)
    kx, kp = jax.random.split(key)

    # small shapes consistent with the module: Bottleneck(inplanes=16, planes=8, stride=2)
    N, inplanes, planes, H, W, stride = 2, 16, 8, 16, 16, 2
    mask_scale, threshold = 0.02, 0.0      # mask_init='uniform', threshold_fn='binarizer'

    x = jax.random.normal(kx, (N, inplanes, H, W), jnp.float32)
    params = init_params(kp, inplanes, planes, stride, mask_scale)

    out = mask_bottleneck_forward(x, params, stride=stride, threshold=threshold)
    out = jax.block_until_ready(out)

    assert out.shape == (N, planes * 4, H // stride, W // stride), out.shape
    ref = reference_forward(x, params, stride=stride, threshold=threshold)
    max_err = float(jnp.max(jnp.abs(out - ref)))
    assert max_err < 5e-3, f"max abs error {max_err}"
    print("KERNEL_OK")
</pallas_src>

<mosaic_0001>
module attributes {stable_mosaic.version = 11 : i64} {
  func.func @_conv1x1_bn_kernel(%arg0: i32, %arg1: memref<256x16xbf16, #tpu.memory_space<vmem>>, %arg2: memref<16x8xbf16, #tpu.memory_space<vmem>>, %arg3: memref<1x8xf32, #tpu.memory_space<vmem>>, %arg4: memref<1x8xf32, #tpu.memory_space<vmem>>, %arg5: memref<256x8xf32, #tpu.memory_space<vmem>>) attributes {dimension_semantics = [#tpu.dimension_semantics<parallel>], iteration_bounds = array<i64: 2>, scalar_prefetch = 0 : i64, scratch_operands = 0 : i64, tpu.core_type = #tpu.core_type<tc>, window_params = [{transform_indices = @transform_0, window_bounds = array<i64: 256, 16>}, {pipeline_mode = #tpu.pipeline_mode<synchronous>, transform_indices = @transform_1, window_bounds = array<i64: 16, 8>}, {pipeline_mode = #tpu.pipeline_mode<synchronous>, transform_indices = @transform_2, window_bounds = array<i64: 1, 8>}, {pipeline_mode = #tpu.pipeline_mode<synchronous>, transform_indices = @transform_3, window_bounds = array<i64: 1, 8>}, {transform_indices = @transform_4, window_bounds = array<i64: 256, 8>}]} {
    %c0 = arith.constant 0 : index
    %c0_0 = arith.constant 0 : index
    %0 = vector.load %arg1[%c0, %c0_0] : memref<256x16xbf16, #tpu.memory_space<vmem>>, vector<256x16xbf16>
    %c0_1 = arith.constant 0 : index
    %c0_2 = arith.constant 0 : index
    %1 = vector.load %arg2[%c0_1, %c0_2] : memref<16x8xbf16, #tpu.memory_space<vmem>>, vector<16x8xbf16>
    %cst = arith.constant dense<0.000000e+00> : vector<256x8xf32>
    %2 = tpu.matmul %0, %1, %cst {dimension_numbers = #tpu.dot_dimension_numbers<[1], [0], [0], [1], [0, 0, 1, 1], [], []>} : vector<256x16xbf16>, vector<16x8xbf16>, vector<256x8xf32> -> vector<256x8xf32>
    %c0_3 = arith.constant 0 : index
    %c0_4 = arith.constant 0 : index
    %3 = vector.load %arg3[%c0_3, %c0_4] : memref<1x8xf32, #tpu.memory_space<vmem>>, vector<1x8xf32>
    %4 = vector.broadcast %3 : vector<1x8xf32> to vector<256x8xf32>
    %5 = arith.mulf %2, %4 : vector<256x8xf32>
    %c0_5 = arith.constant 0 : index
    %c0_6 = arith.constant 0 : index
    %6 = vector.load %arg4[%c0_5, %c0_6] : memref<1x8xf32, #tpu.memory_space<vmem>>, vector<1x8xf32>
    %7 = vector.broadcast %6 : vector<1x8xf32> to vector<256x8xf32>
    %8 = arith.addf %5, %7 : vector<256x8xf32>
    %cst_7 = arith.constant 0.000000e+00 : f32
    %9 = vector.broadcast %cst_7 : f32 to vector<256x8xf32>
    %10 = arith.maximumf %8, %9 : vector<256x8xf32>
    %c0_8 = arith.constant 0 : index
    %c0_9 = arith.constant 0 : index
    %11 = vector.load %arg5[%c0_8, %c0_9] : memref<256x8xf32, #tpu.memory_space<vmem>>, vector<256x8xf32>
    tpu.vector_store %arg5[%c0_8, %c0_9], %10 {strides = array<i32>} : memref<256x8xf32, #tpu.memory_space<vmem>>, vector<256x8xf32>,
    return
  }
  func.func @transform_0(%arg0: i32) -> (i32, i32) {
    %c0_i32 = arith.constant 0 : i32
    %c0_i32_0 = arith.constant 0 : i32
    return %arg0, %c0_i32 : i32, i32
  }
  func.func @transform_1(%arg0: i32) -> (i32, i32) {
    %c0_i32 = arith.constant 0 : i32
    %c0_i32_0 = arith.constant 0 : i32
    %c0_i32_1 = arith.constant 0 : i32
    return %c0_i32, %c0_i32_0 : i32, i32
  }
  func.func @transform_2(%arg0: i32) -> (i32, i32) {
    %c0_i32 = arith.constant 0 : i32
    %c0_i32_0 = arith.constant 0 : i32
    %c0_i32_1 = arith.constant 0 : i32
    return %c0_i32, %c0_i32_0 : i32, i32
  }
  func.func @transform_3(%arg0: i32) -> (i32, i32) {
    %c0_i32 = arith.constant 0 : i32
    %c0_i32_0 = arith.constant 0 : i32
    %c0_i32_1 = arith.constant 0 : i32
    return %c0_i32, %c0_i32_0 : i32, i32
  }
  func.func @transform_4(%arg0: i32) -> (i32, i32) {
    %c0_i32 = arith.constant 0 : i32
    %c0_i32_0 = arith.constant 0 : i32
    return %arg0, %c0_i32 : i32, i32
  }
}

</mosaic_0001>

<llo_original>
// kernel: tpu_custom_call.1
$region0: #{tpu_custom_call.1}
  #allocation0 [shape = 'u32[]', space=smem, size = 0x4, offset = 0x4, fixed_abs, tag = 'smem constant byte address 0x4 - core index']
  #allocation1 [shape = 'u32[72,128]{1,0:T(1,128)}', space=vmem, size = 0x9000, scoped, tag = 'internal scratch']
  %s0 = inlined_call_operand.vmem [shape: bf16[512,16], index: 0, kind: input, shape index: {}]
  %s1 = inlined_call_operand.vmem [shape: bf16[16,8], index: 1, kind: input, shape index: {}]
  %s2 = inlined_call_operand.vmem [shape: f32[1,8], index: 2, kind: input, shape index: {}]
  %s3 = inlined_call_operand.vmem [shape: f32[1,8], index: 3, kind: input, shape index: {}]
  %s4 = inlined_call_operand.vmem [shape: f32[512,8], index: 4, kind: output, shape index: {}]
  %s5 = sld [smem:[#allocation0]]
  $region49: #{tpu_custom_call.1} parent=0
    _
  %s7 = ssub.s32 1, %s5
  %s8 = scalar_select 0, %s7, %s5
  loop: start=0, step=1, limit=4
  $region2: #{tpu_custom_call.1} parent=0 // loop_pre_header
    _
  $region3: #{tpu_custom_call.1} parent=0 // loop_header
    %s10 = sphi 0, %s14
    %p11 = scmp.ge.s32.totalorder %s10, 4
    %s20 = sphi 0, %s22
    %s23 = sphi 0, %s20
    %s24 = sphi 0, %s23
    %s40 = sphi 0, %s24
    %s44 = sphi 0, %s44
    %s46 = sphi 0, %s44
    %s47 = sphi 0, %s46
    %s61 = sphi 0, %s47
    %s65 = sphi 0, %s65
    %s67 = sphi 0, %s65
    %s68 = sphi 0, %s67
    %s82 = sphi 0, %s68
    %s86 = sphi 0, %s86
    %s88 = sphi 0, %s86
    %s89 = sphi 0, %s88
    %s103 = sphi 0, %s89
    %s109 = sphi 0, %s111
    %s112 = sphi 0, %s109
    %s113 = sphi 0, %s112
    %s129 = sphi 0, %s113
  $region4: #{tpu_custom_call.1} parent=0 // loop_header_branch
    %13 = sbr.rel (%p11) target = $region8
  $region5: #{tpu_custom_call.1} parent=0 // loop_body
    %s15 = ssub.s32 %s10, 1
    %s16 = ssub.s32 %s10, 2
    %s17 = sadd.s32 %s10, 1
    %s18 = ssub.s32 %s10, %s17
    %p19 = scmp.eq.s32.totalorder %s18, 0
    %s21 = sadd.s32 %s20, 1
    %s22 = scalar_select %p19, %s20, %s21
    %p25 = pneg %p19
    %p26 = scmp.eq.s32.totalorder %s10, 1
    %p27 = por %p25, %p26
    %p28 = scmp.ne.s32.totalorder %s20, %s23
    %p29 = scmp.eq.s32.totalorder %s10, 0
    %p30 = por %p28, %p29
    %p31 = scmp.ne.s32.totalorder %s20, %s23
    %p32 = scmp.eq.s32.totalorder %s15, 1
    %p33 = por %p31, %p32
    %p34 = scmp.ne.s32.totalorder %s23, %s24
    %p35 = scmp.eq.s32.totalorder %s15, 0
    %p36 = por %p34, %p35
    %p37 = scmp.ne.s32.totalorder %s23, %s24
    %p38 = scmp.eq.s32.totalorder %s16, 1
    %p39 = por %p37, %p38
    %p41 = scmp.ne.s32.totalorder %s24, %s40
    %p42 = scmp.eq.s32.totalorder %s16, 0
    %p43 = por %p41, %p42
    %s45 = sadd.s32 %s44, 1
    %p48 = scmp.eq.s32.totalorder %s10, 1
    %p49 = scmp.ne.s32.totalorder %s44, %s46
    %p50 = scmp.eq.s32.totalorder %s10, 0
    %p51 = por %p49, %p50
    %p52 = scmp.ne.s32.totalorder %s44, %s46
    %p53 = scmp.eq.s32.totalorder %s15, 1
    %p54 = por %p52, %p53
    %p55 = scmp.ne.s32.totalorder %s46, %s47
    %p56 = scmp.eq.s32.totalorder %s15, 0
    %p57 = por %p55, %p56
    %p58 = scmp.ne.s32.totalorder %s46, %s47
    %p59 = scmp.eq.s32.totalorder %s16, 1
    %p60 = por %p58, %p59
    %p62 = scmp.ne.s32.totalorder %s47, %s61
    %p63 = scmp.eq.s32.totalorder %s16, 0
    %p64 = por %p62, %p63
    %s66 = sadd.s32 %s65, 1
    %p69 = scmp.eq.s32.totalorder %s10, 1
    %p70 = scmp.ne.s32.totalorder %s65, %s67
    %p71 = scmp.eq.s32.totalorder %s10, 0
    %p72 = por %p70, %p71
    %p73 = scmp.ne.s32.totalorder %s65, %s67
    %p74 = scmp.eq.s32.totalorder %s15, 1
    %p75 = por %p73, %p74
    %p76 = scmp.ne.s32.totalorder %s67, %s68
    %p77 = scmp.eq.s32.totalorder %s15, 0
    %p78 = por %p76, %p77
    %p79 = scmp.ne.s32.totalorder %s67, %s68
    %p80 = scmp.eq.s32.totalorder %s16, 1
    %p81 = por %p79, %p80
    %p83 = scmp.ne.s32.totalorder %s68, %s82
    %p84 = scmp.eq.s32.totalorder %s16, 0
    %p85 = por %p83, %p84
    %s87 = sadd.s32 %s86, 1
    %p90 = scmp.eq.s32.totalorder %s10, 1
    %p91 = scmp.ne.s32.totalorder %s86, %s88
    %p92 = scmp.eq.s32.totalorder %s10, 0
    %p93 = por %p91, %p92
    %p94 = scmp.ne.s32.totalorder %s86, %s88
    %p95 = scmp.eq.s32.totalorder %s15, 1
    %p96 = por %p94, %p95
    %p97 = scmp.ne.s32.totalorder %s88, %s89
    %p98 = scmp.eq.s32.totalorder %s15, 0
    %p99 = por %p97, %p98
    %p100 = scmp.ne.s32.totalorder %s88, %s89
    %p101 = scmp.eq.s32.totalorder %s16, 1
    %p102 = por %p100, %p101
    %p104 = scmp.ne.s32.totalorder %s89, %s103
    %p105 = scmp.eq.s32.totalorder %s16, 0
    %p106 = por %p104, %p105
    %s107 = ssub.s32 %s10, %s17
    %p108 = scmp.eq.s32.totalorder %s107, 0
    %s110 = sadd.s32 %s109, 1
    %s111 = scalar_select %p108, %s109, %s110
    %p114 = pneg %p108
    %p115 = scmp.eq.s32.totalorder %s10, 1
    %p116 = por %p114, %p115
    %p117 = scmp.ne.s32.totalorder %s109, %s112
    %p118 = scmp.eq.s32.totalorder %s10, 0
    %p119 = por %p117, %p118
    %p120 = scmp.ne.s32.totalorder %s109, %s112
    %p121 = scmp.eq.s32.totalorder %s15, 1
    %p122 = por %p120, %p121
    %p123 = scmp.ne.s32.totalorder %s112, %s113
    %p124 = scmp.eq.s32.totalorder %s15, 0
    %p125 = por %p123, %p124
    %p126 = scmp.ne.s32.totalorder %s112, %s113
    %p127 = scmp.eq.s32.totalorder %s16, 1
    %p128 = por %p126, %p127
    %p130 = scmp.ne.s32.totalorder %s113, %s129
    %p131 = scmp.eq.s32.totalorder %s16, 0
    %p132 = por %p130, %p131
    %p133 = scmp.le.s32.totalorder 1, %s10
    %p134 = scmp.lt.s32.totalorder %s10, 3
    %p135 = pnand %p133, %p134
    %p136 = pneg %p135
    // Predicated region
    $region9: #{tpu_custom_call.1} parent=5 // pred_check
      _
    $region10: #{tpu_custom_call.1} parent=5 // pred_check_branch
      %138 = sbr.rel (%p135) target = $region12
    $region11: #{tpu_custom_call.1} parent=5 // pred_region
      %s139 = ssub.s32 %s10, 1
      // Predicated region
      $region13: #{tpu_custom_call.1} parent=11 // pred_check
        %p140 = pneg %p57
      $region14: #{tpu_custom_call.1} parent=11 // pred_check_branch
        %142 = sbr.rel (%p140) target = $region16
      $region15: #{tpu_custom_call.1} parent=11 // pred_region
        _
      $region16: #{tpu_custom_call.1} parent=11 // pred_fallthru
        _
      // Predicated region
      $region17: #{tpu_custom_call.1} parent=11 // pred_check
        %p143 = pneg %p78
      $region18: #{tpu_custom_call.1} parent=11 // pred_check_branch
        %145 = sbr.rel (%p143) target = $region20
      $region19: #{tpu_custom_call.1} parent=11 // pred_region
        _
      $region20: #{tpu_custom_call.1} parent=11 // pred_fallthru
        _
      // Predicated region
      $region21: #{tpu_custom_call.1} parent=11 // pred_check
        %p146 = pneg %p99
      $region22: #{tpu_custom_call.1} parent=11 // pred_check_branch
        %148 = sbr.rel (%p146) target = $region24
      $region23: #{tpu_custom_call.1} parent=11 // pred_region
        _
      $region24: #{tpu_custom_call.1} parent=11 // pred_fallthru
        _
    $region12: #{tpu_custom_call.1} parent=5 // pred_fallthru
      _
    %p149 = scmp.lt.s32.totalorder %s10, 2
    // Predicated region
    $region25: #{tpu_custom_call.1} parent=5 // pred_check
      %p150 = pneg %p149
    $region26: #{tpu_custom_call.1} parent=5 // pred_check_branch
      %152 = sbr.rel (%p150) target = $region28
    $region27: #{tpu_custom_call.1} parent=5 // pred_region
      // Predicated region
      $region29: #{tpu_custom_call.1} parent=27 // pred_check
        %p153 = pneg %p30
      $region30: #{tpu_custom_call.1} parent=27 // pred_check_branch
        %155 = sbr.rel (%p153) target = $region32
      $region31: #{tpu_custom_call.1} parent=27 // pred_region
        %s156 = smul.u32 32, %s10
        %p157 = scmp.lt.s32.totalorder %s156, 63
        %s158 = scalar_select %p157, %s156, 63
        %s159 = smul.addr %s158, 4
        %s160 = scalar_lea.vmem %s0, %s159
        %s161 = smul.u32 32, %s10
      $region32: #{tpu_custom_call.1} parent=27 // pred_fallthru
        _
    $region28: #{tpu_custom_call.1} parent=5 // pred_fallthru
      _
    %p162 = scmp.le.s32.totalorder 1, %s10
    %p163 = scmp.lt.s32.totalorder %s10, 3
    %p164 = pnand %p162, %p163
    %p165 = pneg %p164
    // Predicated region
    $region33: #{tpu_custom_call.1} parent=5 // pred_check
      _
    $region34: #{tpu_custom_call.1} parent=5 // pred_check_branch
      %167 = sbr.rel (%p164) target = $region36
    $region35: #{tpu_custom_call.1} parent=5 // pred_region
      %s168 = ssub.s32 %s10, 1
      %s169 = smul.u32 32, %s15
      %p170 = scmp.lt.s32.totalorder %s169, 63
      %s171 = scalar_select %p170, %s169, 63
      %s172 = smul.addr %s171, 4
      %s173 = scalar_lea.vmem %s0, %s172
      %p174 = pneg %p36
      %p175 = pneg %p33
      %p176 = pneg %p57
      %p177 = pneg %p54
      %p178 = pneg %p78
      %p179 = pneg %p75
      %p180 = pneg %p99
      %p181 = pneg %p96
      %p182 = pneg %p125
      %p183 = pneg %p122
      %s184 = smul.u32 32, %s15
      %p185 = scmp.lt.s32.totalorder %s184, 63
      %s186 = scalar_select %p185, %s184, 63
      %s187 = smul.addr %s186, 8
      %s188 = scalar_lea.vmem %s4, %s187
      %s189 = smul.u32 32, %s15
      %p190 = scmp.lt.s32.totalorder %s189, 63
      %s191 = scalar_select %p190, %s189, 63
      %s192 = smul.addr %s191, 4
      %s193 = scalar_lea.vmem %s0, %s192
      %s194 = smul.u32 32, %s15
      %s195 = smul.u32 32, %s15
      %p196 = scmp.lt.s32.totalorder %s195, 63
      %s197 = scalar_select %p196, %s195, 63
      %s198 = smul.addr %s197, 8
      %s199 = scalar_lea.vmem %s4, %s198
      %s200 = smul.u32 32, %s15
      %v202 = vld [vmem:[%s193] sm:$0xf]
      %v203 = vld [vmem:[%s193 + $0x4] sm:$0xf]
      %v204 = vld [vmem:[%s193 + $0x8] sm:$0xf]
      %v205 = vld [vmem:[%s193 + $0xc] sm:$0xf]
      %v206 = vld [vmem:[%s193 + $0x10] sm:$0xf]
      %v207 = vld [vmem:[%s193 + $0x14] sm:$0xf]
      %v208 = vld [vmem:[%s193 + $0x18] sm:$0xf]
      %v209 = vld [vmem:[%s193 + $0x1c] sm:$0xf]
      %v210 = vld [vmem:[%s193 + $0x20] sm:$0xf]
      %v211 = vld [vmem:[%s193 + $0x24] sm:$0xf]
      %v212 = vld [vmem:[%s193 + $0x28] sm:$0xf]
      %v213 = vld [vmem:[%s193 + $0x2c] sm:$0xf]
      %v214 = vld [vmem:[%s193 + $0x30] sm:$0xf]
      %v215 = vld [vmem:[%s193 + $0x34] sm:$0xf]
      %v216 = vld [vmem:[%s193 + $0x38] sm:$0xf]
      %v217 = vld [vmem:[%s193 + $0x3c] sm:$0xf]
      %v218 = vld [vmem:[%s193 + $0x40] sm:$0xf]
      %v219 = vld [vmem:[%s193 + $0x44] sm:$0xf]
      %v220 = vld [vmem:[%s193 + $0x48] sm:$0xf]
      %v221 = vld [vmem:[%s193 + $0x4c] sm:$0xf]
      %v222 = vld [vmem:[%s193 + $0x50] sm:$0xf]
      %v223 = vld [vmem:[%s193 + $0x54] sm:$0xf]
      %v224 = vld [vmem:[%s193 + $0x58] sm:$0xf]
      %v225 = vld [vmem:[%s193 + $0x5c] sm:$0xf]
      %v226 = vld [vmem:[%s193 + $0x60] sm:$0xf]
      %v227 = vld [vmem:[%s193 + $0x64] sm:$0xf]
      %v228 = vld [vmem:[%s193 + $0x68] sm:$0xf]
      %v229 = vld [vmem:[%s193 + $0x6c] sm:$0xf]
      %v230 = vld [vmem:[%s193 + $0x70] sm:$0xf]
      %v231 = vld [vmem:[%s193 + $0x74] sm:$0xf]
      %v232 = vld [vmem:[%s193 + $0x78] sm:$0xf]
      %v233 = vld [vmem:[%s193 + $0x7c] sm:$0xf]
      %v234 = vld [vmem:[%s1] sm:$0xf]
      %v235 = vld [vmem:[%s1 + $0x4] sm:$0xf]
      %v268 = vunpack.c.l.b16 %v202
      %v269 = vunpack.c.l.b16 %v203
      %v270 = vunpack.c.l.b16 %v204
      %v271 = vunpack.c.l.b16 %v205
      %v272 = vunpack.c.l.b16 %v206
      %v273 = vunpack.c.l.b16 %v207
      %v274 = vunpack.c.l.b16 %v208
      %v275 = vunpack.c.l.b16 %v209
      %v276 = vunpack.c.l.b16 %v210
      %v277 = vunpack.c.l.b16 %v211
      %v278 = vunpack.c.l.b16 %v212
      %v279 = vunpack.c.l.b16 %v213
      %v280 = vunpack.c.l.b16 %v214
      %v281 = vunpack.c.l.b16 %v215
      %v282 = vunpack.c.l.b16 %v216
      %v283 = vunpack.c.l.b16 %v217
      %v284 = vunpack.c.l.b16 %v218
      %v285 = vunpack.c.l.b16 %v219
      %v286 = vunpack.c.l.b16 %v220
      %v287 = vunpack.c.l.b16 %v221
      %v288 = vunpack.c.l.b16 %v222
      %v289 = vunpack.c.l.b16 %v223
      %v290 = vunpack.c.l.b16 %v224
      %v291 = vunpack.c.l.b16 %v225
      %v292 = vunpack.c.l.b16 %v226
      %v293 = vunpack.c.l.b16 %v227
      %v294 = vunpack.c.l.b16 %v228
      %v295 = vunpack.c.l.b16 %v229
      %v296 = vunpack.c.l.b16 %v230
      %v297 = vunpack.c.l.b16 %v231
      %v298 = vunpack.c.l.b16 %v232
      %v299 = vunpack.c.l.b16 %v233
      %v300 = vpack.c.b16 %v269, %v268
      %v301 = vpack.c.b16 %v271, %v270
      %v302 = vpack.c.b16 %v273, %v272
      %v303 = vpack.c.b16 %v275, %v274
      %v304 = vpack.c.b16 %v277, %v276
      %v305 = vpack.c.b16 %v279, %v278
      %v306 = vpack.c.b16 %v281, %v280
      %v307 = vpack.c.b16 %v283, %v282
      %v308 = vpack.c.b16 %v285, %v284
      %v309 = vpack.c.b16 %v287, %v286
      %v310 = vpack.c.b16 %v289, %v288
      %v311 = vpack.c.b16 %v291, %v290
      %v312 = vpack.c.b16 %v293, %v292
      %v313 = vpack.c.b16 %v295, %v294
      %v314 = vpack.c.b16 %v297, %v296
      %v315 = vpack.c.b16 %v299, %v298
      %v318 = vunpack.c.l.b16 %v234
      %v319 = vunpack.c.l.b16 %v235
      %v320 = vpack.c.b16 %v319, %v318
      %vm322 = vcmask 130048
      %v324 = vsel %vm322, %v300, 0
      %v327 = vsel %vm322, %v301, 0
      %v330 = vsel %vm322, %v302, 0
      %v333 = vsel %vm322, %v303, 0
      %v336 = vsel %vm322, %v304, 0
      %v339 = vsel %vm322, %v305, 0
      %v342 = vsel %vm322, %v306, 0
      %v345 = vsel %vm322, %v307, 0
      %v348 = vsel %vm322, %v308, 0
      %v351 = vsel %vm322, %v309, 0
      %v354 = vsel %vm322, %v310, 0
      %v357 = vsel %vm322, %v311, 0
      %v360 = vsel %vm322, %v312, 0
      %v363 = vsel %vm322, %v313, 0
      %v366 = vsel %vm322, %v314, 0
      %v369 = vsel %vm322, %v315, 0
      %371 = vmatpush.bf16.msra.mxu0 0
      %372 = vmatpush.bf16.msra.mxu0 0
      %373 = vmatpush.bf16.msra.mxu0 0
      %374 = vmatpush.bf16.msra.mxu0 0
      %375 = vmatpush.bf16.msra.mxu0 0
      %376 = vmatpush.bf16.msra.mxu0 0
      %377 = vmatpush.bf16.msra.mxu0 0
      %378 = vmatpush.bf16.msra.mxu0 %v320
      %379 = vmatmul.bf16.gmra.mxu0 %v324
      %v380 = vpop.f32.mrf.mxu0
      %v381 = vadd.f32 0.0, %v380
      %v382 = vpop.f32.mrf.mxu0
      %v383 = vadd.f32 0.0, %v382
      %384 = vmatmul.bf16.gmra.mxu0 %v327
      %v385 = vpop.f32.mrf.mxu0
      %v386 = vadd.f32 0.0, %v385
      %v387 = vpop.f32.mrf.mxu0
      %v388 = vadd.f32 0.0, %v387
      %389 = vmatmul.bf16.gmra.mxu0 %v330
      %v390 = vpop.f32.mrf.mxu0
      %v391 = vadd.f32 0.0, %v390
      %v392 = vpop.f32.mrf.mxu0
      %v393 = vadd.f32 0.0, %v392
      %394 = vmatmul.bf16.gmra.mxu0 %v333
      %v395 = vpop.f32.mrf.mxu0
      %v396 = vadd.f32 0.0, %v395
      %v397 = vpop.f32.mrf.mxu0
      %v398 = vadd.f32 0.0, %v397
      %399 = vmatmul.bf16.gmra.mxu0 %v336
      %v400 = vpop.f32.mrf.mxu0
      %v401 = vadd.f32 0.0, %v400
      %v402 = vpop.f32.mrf.mxu0
      %v403 = vadd.f32 0.0, %v402
      %404 = vmatmul.bf16.gmra.mxu0 %v339
      %v405 = vpop.f32.mrf.mxu0
      %v406 = vadd.f32 0.0, %v405
      %v407 = vpop.f32.mrf.mxu0
      %v408 = vadd.f32 0.0, %v407
      %409 = vmatmul.bf16.gmra.mxu0 %v342
      %v410 = vpop.f32.mrf.mxu0
      %v411 = vadd.f32 0.0, %v410
      %v412 = vpop.f32.mrf.mxu0
      %v413 = vadd.f32 0.0, %v412
      %414 = vmatmul.bf16.gmra.mxu0 %v345
      %v415 = vpop.f32.mrf.mxu0
      %v416 = vadd.f32 0.0, %v415
      %v417 = vpop.f32.mrf.mxu0
      %v418 = vadd.f32 0.0, %v417
      %419 = vmatmul.bf16.gmra.mxu0 %v348
      %v420 = vpop.f32.mrf.mxu0
      %v421 = vadd.f32 0.0, %v420
      %v422 = vpop.f32.mrf.mxu0
      %v423 = vadd.f32 0.0, %v422
      %424 = vmatmul.bf16.gmra.mxu0 %v351
      %v425 = vpop.f32.mrf.mxu0
      %v426 = vadd.f32 0.0, %v425
      %v427 = vpop.f32.mrf.mxu0
      %v428 = vadd.f32 0.0, %v427
      %429 = vmatmul.bf16.gmra.mxu0 %v354
      %v430 = vpop.f32.mrf.mxu0
      %v431 = vadd.f32 0.0, %v430
      %v432 = vpop.f32.mrf.mxu0
      %v433 = vadd.f32 0.0, %v432
      %434 = vmatmul.bf16.gmra.mxu0 %v357
      %v435 = vpop.f32.mrf.mxu0
      %v436 = vadd.f32 0.0, %v435
      %v437 = vpop.f32.mrf.mxu0
      %v438 = vadd.f32 0.0, %v437
      %439 = vmatmul.bf16.gmra.mxu0 %v360
      %v440 = vpop.f32.mrf.mxu0
      %v441 = vadd.f32 0.0, %v440
      %v442 = vpop.f32.mrf.mxu0
      %v443 = vadd.f32 0.0, %v442
      %444 = vmatmul.bf16.gmra.mxu0 %v363
      %v445 = vpop.f32.mrf.mxu0
      %v446 = vadd.f32 0.0, %v445
      %v447 = vpop.f32.mrf.mxu0
      %v448 = vadd.f32 0.0, %v447
      %449 = vmatmul.bf16.gmra.mxu0 %v366
      %v450 = vpop.f32.mrf.mxu0
      %v451 = vadd.f32 0.0, %v450
      %v452 = vpop.f32.mrf.mxu0
      %v453 = vadd.f32 0.0, %v452
      %454 = vmatmul.bf16.gmra.mxu0 %v369
      %v455 = vpop.f32.mrf.mxu0
      %v456 = vadd.f32 0.0, %v455
      %v457 = vpop.f32.mrf.mxu0
      %v458 = vadd.f32 0.0, %v457
      %459 = vdwg.mxu0
      %v460 = vld [vmem:[%s2] sm:$0x1]
      %v462 = vperm.slane %v460, 0
      %v464 = vmul.f32 %v381, %v462
      %v465 = vmul.f32 %v383, %v462
      %v466 = vmul.f32 %v386, %v462
      %v467 = vmul.f32 %v388, %v462
      %v468 = vmul.f32 %v391, %v462
      %v469 = vmul.f32 %v393, %v462
      %v470 = vmul.f32 %v396, %v462
      %v471 = vmul.f32 %v398, %v462
      %v472 = vmul.f32 %v401, %v462
      %v473 = vmul.f32 %v403, %v462
      %v474 = vmul.f32 %v406, %v462
      %v475 = vmul.f32 %v408, %v462
      %v476 = vmul.f32 %v411, %v462
      %v477 = vmul.f32 %v413, %v462
      %v478 = vmul.f32 %v416, %v462
      %v479 = vmul.f32 %v418, %v462
      %v480 = vmul.f32 %v421, %v462
      %v481 = vmul.f32 %v423, %v462
      %v482 = vmul.f32 %v426, %v462
      %v483 = vmul.f32 %v428, %v462
      %v484 = vmul.f32 %v431, %v462
      %v485 = vmul.f32 %v433, %v462
      %v486 = vmul.f32 %v436, %v462
      %v487 = vmul.f32 %v438, %v462
      %v488 = vmul.f32 %v441, %v462
      %v489 = vmul.f32 %v443, %v462
      %v490 = vmul.f32 %v446, %v462
      %v491 = vmul.f32 %v448, %v462
      %v492 = vmul.f32 %v451, %v462
      %v493 = vmul.f32 %v453, %v462
      %v494 = vmul.f32 %v456, %v462
      %v495 = vmul.f32 %v458, %v462
      %v496 = vld [vmem:[%s3] sm:$0x1]
      %v498 = vperm.slane %v496, 0
      %v500 = vadd.f32 %v464, %v498
      %v501 = vadd.f32 %v465, %v498
      %v502 = vadd.f32 %v466, %v498
      %v503 = vadd.f32 %v467, %v498
      %v504 = vadd.f32 %v468, %v498
      %v505 = vadd.f32 %v469, %v498
      %v506 = vadd.f32 %v470, %v498
      %v507 = vadd.f32 %v471, %v498
      %v508 = vadd.f32 %v472, %v498
      %v509 = vadd.f32 %v473, %v498
      %v510 = vadd.f32 %v474, %v498
      %v511 = vadd.f32 %v475, %v498
      %v512 = vadd.f32 %v476, %v498
      %v513 = vadd.f32 %v477, %v498
      %v514 = vadd.f32 %v478, %v498
      %v515 = vadd.f32 %v479, %v498
      %v516 = vadd.f32 %v480, %v498
      %v517 = vadd.f32 %v481, %v498
      %v518 = vadd.f32 %v482, %v498
      %v519 = vadd.f32 %v483, %v498
      %v520 = vadd.f32 %v484, %v498
      %v521 = vadd.f32 %v485, %v498
      %v522 = vadd.f32 %v486, %v498
      %v523 = vadd.f32 %v487, %v498
      %v524 = vadd.f32 %v488, %v498
      %v525 = vadd.f32 %v489, %v498
      %v526 = vadd.f32 %v490, %v498
      %v527 = vadd.f32 %v491, %v498
      %v528 = vadd.f32 %v492, %v498
      %v529 = vadd.f32 %v493, %v498
      %v530 = vadd.f32 %v494, %v498
      %v531 = vadd.f32 %v495, %v498
      %v532 = vmax.f32 %v500, 0.0
      %v533 = vmax.f32 %v501, 0.0
      %v534 = vmax.f32 %v502, 0.0
      %v535 = vmax.f32 %v503, 0.0
      %v536 = vmax.f32 %v504, 0.0
      %v537 = vmax.f32 %v505, 0.0
      %v538 = vmax.f32 %v506, 0.0
      %v539 = vmax.f32 %v507, 0.0
      %v540 = vmax.f32 %v508, 0.0
      %v541 = vmax.f32 %v509, 0.0
      %v542 = vmax.f32 %v510, 0.0
      %v543 = vmax.f32 %v511, 0.0
      %v544 = vmax.f32 %v512, 0.0
      %v545 = vmax.f32 %v513, 0.0
      %v546 = vmax.f32 %v514, 0.0
      %v547 = vmax.f32 %v515, 0.0
      %v548 = vmax.f32 %v516, 0.0
      %v549 = vmax.f32 %v517, 0.0
      %v550 = vmax.f32 %v518, 0.0
      %v551 = vmax.f32 %v519, 0.0
      %v552 = vmax.f32 %v520, 0.0
      %v553 = vmax.f32 %v521, 0.0
      %v554 = vmax.f32 %v522, 0.0
      %v555 = vmax.f32 %v523, 0.0
      %v556 = vmax.f32 %v524, 0.0
      %v557 = vmax.f32 %v525, 0.0
      %v558 = vmax.f32 %v526, 0.0
      %v559 = vmax.f32 %v527, 0.0
      %v560 = vmax.f32 %v528, 0.0
      %v561 = vmax.f32 %v529, 0.0
      %v562 = vmax.f32 %v530, 0.0
      %v563 = vmax.f32 %v531, 0.0
      %vm564 = vcmask 64512
      %565 = vst.msk [vmem:[%s199] sm:$0xff] %vm564, %v532
      %566 = vst.msk [vmem:[%s199 + $0x8] sm:$0xff] %vm564, %v533
      %567 = vst.msk [vmem:[%s199 + $0x10] sm:$0xff] %vm564, %v534
      %568 = vst.msk [vmem:[%s199 + $0x18] sm:$0xff] %vm564, %v535
      %569 = vst.msk [vmem:[%s199 + $0x20] sm:$0xff] %vm564, %v536
      %570 = vst.msk [vmem:[%s199 + $0x28] sm:$0xff] %vm564, %v537
      %571 = vst.msk [vmem:[%s199 + $0x30] sm:$0xff] %vm564, %v538
      %572 = vst.msk [vmem:[%s199 + $0x38] sm:$0xff] %vm564, %v539
      %573 = vst.msk [vmem:[%s199 + $0x40] sm:$0xff] %vm564, %v540
      %574 = vst.msk [vmem:[%s199 + $0x48] sm:$0xff] %vm564, %v541
      %575 = vst.msk [vmem:[%s199 + $0x50] sm:$0xff] %vm564, %v542
      %576 = vst.msk [vmem:[%s199 + $0x58] sm:$0xff] %vm564, %v543
      %577 = vst.msk [vmem:[%s199 + $0x60] sm:$0xff] %vm564, %v544
      %578 = vst.msk [vmem:[%s199 + $0x68] sm:$0xff] %vm564, %v545
      %579 = vst.msk [vmem:[%s199 + $0x70] sm:$0xff] %vm564, %v546
      %580 = vst.msk [vmem:[%s199 + $0x78] sm:$0xff] %vm564, %v547
      %581 = vst.msk [vmem:[%s199 + $0x80] sm:$0xff] %vm564, %v548
      %582 = vst.msk [vmem:[%s199 + $0x88] sm:$0xff] %vm564, %v549
      %583 = vst.msk [vmem:[%s199 + $0x90] sm:$0xff] %vm564, %v550
      %584 = vst.msk [vmem:[%s199 + $0x98] sm:$0xff] %vm564, %v551
      %585 = vst.msk [vmem:[%s199 + $0xa0] sm:$0xff] %vm564, %v552
      %586 = vst.msk [vmem:[%s199 + $0xa8] sm:$0xff] %vm564, %v553
      %587 = vst.msk [vmem:[%s199 + $0xb0] sm:$0xff] %vm564, %v554
      %588 = vst.msk [vmem:[%s199 + $0xb8] sm:$0xff] %vm564, %v555
      %589 = vst.msk [vmem:[%s199 + $0xc0] sm:$0xff] %vm564, %v556
      %590 = vst.msk [vmem:[%s199 + $0xc8] sm:$0xff] %vm564, %v557
      %591 = vst.msk [vmem:[%s199 + $0xd0] sm:$0xff] %vm564, %v558
      %592 = vst.msk [vmem:[%s199 + $0xd8] sm:$0xff] %vm564, %v559
      %593 = vst.msk [vmem:[%s199 + $0xe0] sm:$0xff] %vm564, %v560
      %594 = vst.msk [vmem:[%s199 + $0xe8] sm:$0xff] %vm564, %v561
      %595 = vst.msk [vmem:[%s199 + $0xf0] sm:$0xff] %vm564, %v562
      %596 = vst.msk [vmem:[%s199 + $0xf8] sm:$0xff] %vm564, %v563
      %s597 = smul.u32 32, %s15
      %p598 = scmp.lt.s32.totalorder %s597, 63
      %s599 = scalar_select %p598, %s597, 63
      %s600 = smul.addr %s599, 8
      %s601 = scalar_lea.vmem %s4, %s600
      // Predicated region
      $region37: #{tpu_custom_call.1} parent=35 // pred_check
        %p602 = pneg %p122
      $region38: #{tpu_custom_call.1} parent=35 // pred_check_branch
        %604 = sbr.rel (%p602) target = $region40
      $region39: #{tpu_custom_call.1} parent=35 // pred_region
        %s605 = smul.u32 32, %s15
      $region40: #{tpu_custom_call.1} parent=35 // pred_fallthru
        _
    $region36: #{tpu_custom_call.1} parent=5 // pred_fallthru
      _
    %p606 = scmp.le.s32.totalorder 2, %s10
    // Predicated region
    $region41: #{tpu_custom_call.1} parent=5 // pred_check
      %p607 = pneg %p606
    $region42: #{tpu_custom_call.1} parent=5 // pred_check_branch
      %609 = sbr.rel (%p607) target = $region44
    $region43: #{tpu_custom_call.1} parent=5 // pred_region
      %s610 = ssub.s32 %s10, 2
      // Predicated region
      $region45: #{tpu_custom_call.1} parent=43 // pred_check
        %p611 = pneg %p128
      $region46: #{tpu_custom_call.1} parent=43 // pred_check_branch
        %613 = sbr.rel (%p611) target = $region48
      $region47: #{tpu_custom_call.1} parent=43 // pred_region
        %s614 = smul.u32 32, %s16
        %p615 = scmp.lt.s32.totalorder %s614, 63
        %s616 = scalar_select %p615, %s614, 63
        %s617 = smul.addr %s616, 8
        %s618 = scalar_lea.vmem %s4, %s617
      $region48: #{tpu_custom_call.1} parent=43 // pred_fallthru
        _
    $region44: #{tpu_custom_call.1} parent=5 // pred_fallthru
      _
  $region6: #{tpu_custom_call.1} parent=0 // loop_footer
    %s14 = sadd.s32 1, %s10
  $region7: #{tpu_custom_call.1} parent=0 // loop_footer_branch
    %9 = sbr.rel target = $region3
  $region8: #{tpu_custom_call.1} parent=0 // loop_exit
    _

</llo_original>
